<compile_context>
chip_gen: v7x
topology: tpu7x:2x2x1
jax: 0.10.0
libtpu: 0.0.40
codegen_flags: <defaults>
</compile_context>

<pallas_src>
import functools

import jax
import jax.numpy as jnp
from jax import lax
from jax.experimental import pallas as pl
from jax.experimental.pallas import tpu as pltpu


def _actor_kernel(obs_ref, w1_ref, b1_ref, w2_ref, b2_ref, w3_ref, b3_ref,
                  out_ref, *, chunk):
    """One batch tile.

    obs_ref : (T, obs_dim) f32  - natural HBM layout (no wrapper transpose)
    out_ref : (A, T)       f32  - batch on the 128-lane axis (lane-dense store)

    The tile is processed in `chunk`-lane sub-chunks so the live vreg set stays
    bounded even for multi-thousand-lane tiles (decouples "big tile for few
    grid steps" from register pressure).
    """
    # Hoist the (tiny) weight / bias loads once per tile.
    w1 = w1_ref[...]          # (H, obs_dim)
    w2 = w2_ref[...]          # (H, H)
    w3 = w3_ref[...]          # (A, H)
    b1 = b1_ref[...]          # (H, 1)
    b2 = b2_ref[...]          # (H, 1)
    b3 = b3_ref[...]          # (A, 1)

    tile = out_ref.shape[1]
    n_chunks = tile // chunk

    def body(c, carry):
        off = pl.multiple_of(c * chunk, chunk)
        x = obs_ref[pl.ds(off, chunk), :]                       # (chunk, obs_dim)

        # h1 = tanh(W1 @ x^T + b1): contract the obs dim of both operands
        # ("NT" matmul) -> (H, chunk), batch on lanes, f32 accumulation.
        h1 = jnp.tanh(
            lax.dot_general(w1, x, (((1,), (1,)), ((), ())),
                            preferred_element_type=jnp.float32) + b1)
        # h2 = tanh(W2 @ h1 + b2)
        h2 = jnp.tanh(
            jnp.dot(w2, h1, preferred_element_type=jnp.float32) + b2)
        # logits = W3 @ h2 + b3 -> (A, chunk)
        logits = jnp.dot(w3, h2, preferred_element_type=jnp.float32) + b3

        # Numerically stable softmax over the action (sublane) axis; the batch
        # axis stays lane-dense so the store is an unmasked full-lane vst.
        m = jnp.max(logits, axis=0, keepdims=True)
        e = jnp.exp(logits - m)
        inv = pl.reciprocal(jnp.sum(e, axis=0, keepdims=True), approx=False)
        out_ref[:, pl.ds(off, chunk)] = (e * inv).astype(out_ref.dtype)
        return carry

    lax.fori_loop(0, n_chunks, body, 0)


def _round_up(x, m):
    return -(-x // m) * m


def _choose_batch_tiling(batch, max_tile):
    """Pick (batch_tile, padded_batch).

    Large tiles amortize the ~0.35 us per-grid-step pipeline overhead; when the
    batch doesn't divide cleanly, pad up to the tile boundary instead of
    shrinking the tile.  Multi-step grids are kept even so v7x can shard the
    parallel batch axis across its two TensorCores.
    """
    b128 = _round_up(max(batch, 1), 128)
    if b128 <= max_tile:
        return b128, b128                       # single grid step
    steps = -(-b128 // max_tile)
    if steps % 2:                               # even grid for v7x megacore
        steps += 1
    tile = _round_up(-(-b128 // steps), 128)
    return tile, tile * steps


@functools.partial(jax.jit, static_argnames=("max_batch_tile", "batch_major"))
def actor_forward(obs, params, *, max_batch_tile=4096, batch_major=True):
    """Fused Actor MLP forward pass in a single pallas_call.

    obs: (B, obs_dim) float32, natural layout (no host/XLA-side transpose).
    params: PyTorch-layout weights: w1 (H, obs_dim), w2 (H, H), w3 (A, H);
            biases b1/b2/b3 as (out,) or (out, 1) float32.
    returns: (B, A) softmax probabilities if batch_major else (A, B)
             (action-major skips the wrapper-side output transpose entirely).
    """
    w1, w2, w3 = params["w1"], params["w2"], params["w3"]
    B, obs_dim = obs.shape
    hidden_dim = w1.shape[0]
    action_dim = w3.shape[0]

    b1 = jnp.reshape(params["b1"], (hidden_dim, 1)).astype(jnp.float32)
    b2 = jnp.reshape(params["b2"], (hidden_dim, 1)).astype(jnp.float32)
    b3 = jnp.reshape(params["b3"], (action_dim, 1)).astype(jnp.float32)

    batch_tile, b_pad = _choose_batch_tiling(B, max_batch_tile)
    grid = (b_pad // batch_tile,)
    # Lane sub-chunk inside the kernel (keeps the vreg live-set bounded).
    chunk = 256 if batch_tile % 256 == 0 else 128

    obs_p = obs.astype(jnp.float32)
    if b_pad != B:
        obs_p = jnp.pad(obs_p, ((0, b_pad - B), (0, 0)))

    out_t = pl.pallas_call(
        functools.partial(_actor_kernel, chunk=chunk),
        out_shape=jax.ShapeDtypeStruct((action_dim, b_pad), jnp.float32),
        grid_spec=pltpu.PrefetchScalarGridSpec(
            num_scalar_prefetch=0,
            grid=grid,
            in_specs=[
                # obs: tiled over batch (natural layout, batch on sublanes).
                pl.BlockSpec((batch_tile, obs_dim), lambda i: (i, 0)),
                # weights / biases: full (tiny) arrays, same block every step.
                pl.BlockSpec((hidden_dim, obs_dim), lambda i: (0, 0)),
                pl.BlockSpec((hidden_dim, 1), lambda i: (0, 0)),
                pl.BlockSpec((hidden_dim, hidden_dim), lambda i: (0, 0)),
                pl.BlockSpec((hidden_dim, 1), lambda i: (0, 0)),
                pl.BlockSpec((action_dim, hidden_dim), lambda i: (0, 0)),
                pl.BlockSpec((action_dim, 1), lambda i: (0, 0)),
            ],
            # Output tiled over batch along the 128-lane axis (lane-dense).
            out_specs=pl.BlockSpec((action_dim, batch_tile), lambda i: (0, i)),
        ),
        compiler_params=pltpu.CompilerParams(
            dimension_semantics=("parallel",),
        ),
    )(obs_p, w1.astype(jnp.float32), b1, w2.astype(jnp.float32), b2,
      w3.astype(jnp.float32), b3)

    out_t = out_t[:, :B]
    return out_t.T if batch_major else out_t


def init_actor_params(key, obs_dim, action_dim, hidden_dim):
    """PyTorch nn.Linear default init: uniform(-1/sqrt(fan_in), 1/sqrt(fan_in)).
    Weights stored in native PyTorch layout (out_features, in_features)."""
    keys = jax.random.split(key, 6)

    def linear(kw, kb, fan_in, fan_out):
        bound = 1.0 / jnp.sqrt(jnp.float32(fan_in))
        w = jax.random.uniform(kw, (fan_out, fan_in), jnp.float32, -bound, bound)
        b = jax.random.uniform(kb, (fan_out,), jnp.float32, -bound, bound)
        return w, b

    w1, b1 = linear(keys[0], keys[1], obs_dim, hidden_dim)
    w2, b2 = linear(keys[2], keys[3], hidden_dim, hidden_dim)
    w3, b3 = linear(keys[4], keys[5], hidden_dim, action_dim)
    return {"w1": w1, "b1": b1, "w2": w2, "b2": b2, "w3": w3, "b3": b3}


def actor_forward_ref(obs, params):
    """Pure-JAX f32 reference (identical semantics to the PyTorch module)."""
    b1 = jnp.reshape(params["b1"], (-1,))
    b2 = jnp.reshape(params["b2"], (-1,))
    b3 = jnp.reshape(params["b3"], (-1,))
    h1 = jnp.tanh(obs @ params["w1"].T + b1)
    h2 = jnp.tanh(h1 @ params["w2"].T + b2)
    logits = h2 @ params["w3"].T + b3
    return jax.nn.softmax(logits, axis=-1)


if __name__ == "__main__":
    key = jax.random.PRNGKey(0)
    k_params, k_obs, k_obs2 = jax.random.split(key, 3)

    obs_dim, hidden_dim, action_dim = 16, 32, 8
    batch = 300  # exercises the 128-lane padding path (300 -> 384), grid=(1,)

    params = init_actor_params(k_params, obs_dim, action_dim, hidden_dim)
    obs = jax.random.normal(k_obs, (batch, obs_dim), jnp.float32)

    ref = actor_forward_ref(obs, params)
    out = jax.block_until_ready(actor_forward(obs, params))
    assert out.shape == (batch, action_dim)
    assert jnp.allclose(jnp.sum(out, axis=-1), 1.0, atol=1e-5)
    assert jnp.allclose(out, ref, atol=1e-5, rtol=1e-5)

    # Multi-step grid + pad-to-tile-boundary path (forced small tile cap):
    # 600 -> padded 1024, tile=256, grid=(4,).
    obs2 = jax.random.normal(k_obs2, (600, obs_dim), jnp.float32)
    out2 = jax.block_until_ready(actor_forward(obs2, params, max_batch_tile=256))
    assert jnp.allclose(out2, actor_forward_ref(obs2, params),
                        atol=1e-5, rtol=1e-5)

    # Action-major output skips the wrapper-side transpose entirely.
    out_am = jax.block_until_ready(actor_forward(obs, params, batch_major=False))
    assert out_am.shape == (action_dim, batch)
    assert jnp.allclose(out_am.T, out, atol=1e-6)

    print("KERNEL_OK")
</pallas_src>

<mosaic_0001>
module attributes {stable_mosaic.version = 11 : i64} {
  func.func @_actor_kernel(%arg0: i32, %arg1: memref<384x16xf32, #tpu.memory_space<vmem>>, %arg2: memref<32x16xf32, #tpu.memory_space<vmem>>, %arg3: memref<32x1xf32, #tpu.memory_space<vmem>>, %arg4: memref<32x32xf32, #tpu.memory_space<vmem>>, %arg5: memref<32x1xf32, #tpu.memory_space<vmem>>, %arg6: memref<8x32xf32, #tpu.memory_space<vmem>>, %arg7: memref<8x1xf32, #tpu.memory_space<vmem>>, %arg8: memref<8x384xf32, #tpu.memory_space<vmem>>) attributes {dimension_semantics = [#tpu.dimension_semantics<parallel>], iteration_bounds = array<i64: 1>, scalar_prefetch = 0 : i64, scratch_operands = 0 : i64, tpu.core_type = #tpu.core_type<tc>, window_params = [{transform_indices = @transform_0, window_bounds = array<i64: 384, 16>}, {pipeline_mode = #tpu.pipeline_mode<synchronous>, transform_indices = @transform_1, window_bounds = array<i64: 32, 16>}, {pipeline_mode = #tpu.pipeline_mode<synchronous>, transform_indices = @transform_2, window_bounds = array<i64: 32, 1>}, {pipeline_mode = #tpu.pipeline_mode<synchronous>, transform_indices = @transform_3, window_bounds = array<i64: 32, 32>}, {pipeline_mode = #tpu.pipeline_mode<synchronous>, transform_indices = @transform_4, window_bounds = array<i64: 32, 1>}, {pipeline_mode = #tpu.pipeline_mode<synchronous>, transform_indices = @transform_5, window_bounds = array<i64: 8, 32>}, {pipeline_mode = #tpu.pipeline_mode<synchronous>, transform_indices = @transform_6, window_bounds = array<i64: 8, 1>}, {transform_indices = @transform_7, window_bounds = array<i64: 8, 384>}]} {
    %c0 = arith.constant 0 : index
    %c0_0 = arith.constant 0 : index
    %0 = vector.load %arg2[%c0, %c0_0] : memref<32x16xf32, #tpu.memory_space<vmem>>, vector<32x16xf32>
    %c0_1 = arith.constant 0 : index
    %c0_2 = arith.constant 0 : index
    %1 = vector.load %arg4[%c0_1, %c0_2] : memref<32x32xf32, #tpu.memory_space<vmem>>, vector<32x32xf32>
    %c0_3 = arith.constant 0 : index
    %c0_4 = arith.constant 0 : index
    %2 = vector.load %arg6[%c0_3, %c0_4] : memref<8x32xf32, #tpu.memory_space<vmem>>, vector<8x32xf32>
    %c0_5 = arith.constant 0 : index
    %c0_6 = arith.constant 0 : index
    %3 = vector.load %arg3[%c0_5, %c0_6] : memref<32x1xf32, #tpu.memory_space<vmem>>, vector<32x1xf32>
    %c0_7 = arith.constant 0 : index
    %c0_8 = arith.constant 0 : index
    %4 = vector.load %arg5[%c0_7, %c0_8] : memref<32x1xf32, #tpu.memory_space<vmem>>, vector<32x1xf32>
    %c0_9 = arith.constant 0 : index
    %c0_10 = arith.constant 0 : index
    %5 = vector.load %arg7[%c0_9, %c0_10] : memref<8x1xf32, #tpu.memory_space<vmem>>, vector<8x1xf32>
    %c0_i32 = arith.constant 0 : i32
    %c3_i32 = arith.constant 3 : i32
    %6 = arith.addi %c0_i32, %c3_i32 : i32
    %c1_i32 = arith.constant 1 : i32
    scf.for %arg9 = %c0_i32 to %6 step %c1_i32  : i32 {
      %c128_i32 = arith.constant 128 : i32
      %7 = arith.muli %arg9, %c128_i32 : i32
      %8 = tpu.assume_multiple %7, 128 : i32
      %9 = arith.index_cast %8 : i32 to index
      %c0_12 = arith.constant 0 : index
      %10 = vector.load %arg1[%9, %c0_12] : memref<384x16xf32, #tpu.memory_space<vmem>>, vector<128x16xf32>
      %cst = arith.constant dense<0.000000e+00> : vector<32x128xf32>
      %11 = tpu.matmul %0, %10, %cst {dimension_numbers = #tpu.dot_dimension_numbers<[1], [1], [0], [0], [0, 0, 1, 0], [], []>} : vector<32x16xf32>, vector<128x16xf32>, vector<32x128xf32> -> vector<32x128xf32>
      %12 = vector.broadcast %3 : vector<32x1xf32> to vector<32x128xf32>
      %13 = arith.addf %11, %12 : vector<32x128xf32>
      %14 = math.tanh %13 : vector<32x128xf32>
      %cst_13 = arith.constant dense<0.000000e+00> : vector<32x128xf32>
      %15 = tpu.matmul %1, %14, %cst_13 {dimension_numbers = #tpu.dot_dimension_numbers<[1], [0], [0], [1], [0, 0, 1, 1], [], []>} : vector<32x32xf32>, vector<32x128xf32>, vector<32x128xf32> -> vector<32x128xf32>
      %16 = vector.broadcast %4 : vector<32x1xf32> to vector<32x128xf32>
      %17 = arith.addf %15, %16 : vector<32x128xf32>
      %18 = math.tanh %17 : vector<32x128xf32>
      %cst_14 = arith.constant dense<0.000000e+00> : vector<8x128xf32>
      %19 = tpu.matmul %2, %18, %cst_14 {dimension_numbers = #tpu.dot_dimension_numbers<[1], [0], [0], [1], [0, 0, 1, 1], [], []>} : vector<8x32xf32>, vector<32x128xf32>, vector<8x128xf32> -> vector<8x128xf32>
      %20 = vector.broadcast %5 : vector<8x1xf32> to vector<8x128xf32>
      %21 = arith.addf %19, %20 : vector<8x128xf32>
      %cst_15 = arith.constant dense<0xFF800000> : vector<128xf32>
      %22 = vector.multi_reduction <maximumf>, %21, %cst_15 [0] : vector<8x128xf32> to vector<128xf32>
      %23 = vector.shape_cast %22 : vector<128xf32> to vector<1x128xf32>
      %24 = vector.broadcast %23 : vector<1x128xf32> to vector<8x128xf32>
      %25 = arith.subf %21, %24 : vector<8x128xf32>
      %26 = math.exp %25 : vector<8x128xf32>
      %cst_16 = arith.constant dense<0.000000e+00> : vector<128xf32>
      %27 = vector.multi_reduction <add>, %26, %cst_16 [0] : vector<8x128xf32> to vector<128xf32>
      %28 = vector.shape_cast %27 : vector<128xf32> to vector<1x128xf32>
      %29 = tpu.reciprocal %28 : vector<1x128xf32> -> vector<1x128xf32>
      %30 = vector.broadcast %29 : vector<1x128xf32> to vector<8x128xf32>
      %31 = arith.mulf %26, %30 : vector<8x128xf32>
      %c0_17 = arith.constant 0 : index
      %32 = arith.index_cast %8 : i32 to index
      %33 = vector.load %arg8[%c0_17, %32] : memref<8x384xf32, #tpu.memory_space<vmem>>, vector<8x128xf32>
      tpu.vector_store %arg8[%c0_17, %32], %31 {strides = array<i32>} : memref<8x384xf32, #tpu.memory_space<vmem>>, vector<8x128xf32>,
    }
    %c3_i32_11 = arith.constant 3 : i32
    return
  }
  func.func @transform_0(%arg0: i32) -> (i32, i32) {
    %c0_i32 = arith.constant 0 : i32
    %c0_i32_0 = arith.constant 0 : i32
    return %arg0, %c0_i32 : i32, i32
  }
  func.func @transform_1(%arg0: i32) -> (i32, i32) {
    %c0_i32 = arith.constant 0 : i32
    %c0_i32_0 = arith.constant 0 : i32
    %c0_i32_1 = arith.constant 0 : i32
    return %c0_i32, %c0_i32_0 : i32, i32
  }
  func.func @transform_2(%arg0: i32) -> (i32, i32) {
    %c0_i32 = arith.constant 0 : i32
    %c0_i32_0 = arith.constant 0 : i32
    %c0_i32_1 = arith.constant 0 : i32
    return %c0_i32, %c0_i32_0 : i32, i32
  }
  func.func @transform_3(%arg0: i32) -> (i32, i32) {
    %c0_i32 = arith.constant 0 : i32
    %c0_i32_0 = arith.constant 0 : i32
    %c0_i32_1 = arith.constant 0 : i32
    return %c0_i32, %c0_i32_0 : i32, i32
  }
  func.func @transform_4(%arg0: i32) -> (i32, i32) {
    %c0_i32 = arith.constant 0 : i32
    %c0_i32_0 = arith.constant 0 : i32
    %c0_i32_1 = arith.constant 0 : i32
    return %c0_i32, %c0_i32_0 : i32, i32
  }
  func.func @transform_5(%arg0: i32) -> (i32, i32) {
    %c0_i32 = arith.constant 0 : i32
    %c0_i32_0 = arith.constant 0 : i32
    %c0_i32_1 = arith.constant 0 : i32
    return %c0_i32, %c0_i32_0 : i32, i32
  }
  func.func @transform_6(%arg0: i32) -> (i32, i32) {
    %c0_i32 = arith.constant 0 : i32
    %c0_i32_0 = arith.constant 0 : i32
    %c0_i32_1 = arith.constant 0 : i32
    return %c0_i32, %c0_i32_0 : i32, i32
  }
  func.func @transform_7(%arg0: i32) -> (i32, i32) {
    %c0_i32 = arith.constant 0 : i32
    %c0_i32_0 = arith.constant 0 : i32
    return %c0_i32, %arg0 : i32, i32
  }
}

</mosaic_0001>

<llo_original>
// kernel: actor_forward.1
$region0: #{actor_forward.1}
  #allocation0 [shape = 'u32[]', space=smem, size = 0x4, offset = 0x4, fixed_abs, tag = 'smem constant byte address 0x4 - core index']
  #allocation1 [shape = 'u32[144,128]{1,0:T(1,128)}', space=vmem, size = 0x12000, scoped, tag = 'internal scratch']
  %s0 = inlined_call_operand.vmem [shape: f32[384,16], index: 0, kind: input, shape index: {}]
  %s1 = inlined_call_operand.vmem [shape: f32[32,16], index: 1, kind: input, shape index: {}]
  %s2 = inlined_call_operand.vmem [shape: f32[32,1], index: 2, kind: input, shape index: {}]
  %s3 = inlined_call_operand.vmem [shape: f32[32,32], index: 3, kind: input, shape index: {}]
  %s4 = inlined_call_operand.vmem [shape: f32[32,1], index: 4, kind: input, shape index: {}]
  %s5 = inlined_call_operand.vmem [shape: f32[8,32], index: 5, kind: input, shape index: {}]
  %s6 = inlined_call_operand.vmem [shape: f32[8,1], index: 6, kind: input, shape index: {}]
  %s7 = inlined_call_operand.vmem [shape: f32[8,384], index: 7, kind: output, shape index: {}]
  %s8 = sld [smem:[#allocation0]]
  $region45: #{actor_forward.1} parent=0
    _
  %s10 = ssub.s32 1, %s8
  %s11 = scalar_select 0, %s10, %s8
  // Predicated region
  $region2: #{actor_forward.1} parent=0 // pred_check
    _
  $region3: #{actor_forward.1} parent=0 // pred_check_branch
    %13 = sbr.rel (0) target = $region5
  $region4: #{actor_forward.1} parent=0 // pred_region
    _
  $region5: #{actor_forward.1} parent=0 // pred_fallthru
    _
  // Predicated region
  $region6: #{actor_forward.1} parent=0 // pred_check
    _
  $region7: #{actor_forward.1} parent=0 // pred_check_branch
    %15 = sbr.rel (0) target = $region9
  $region8: #{actor_forward.1} parent=0 // pred_region
    _
  $region9: #{actor_forward.1} parent=0 // pred_fallthru
    _
  // Predicated region
  $region10: #{actor_forward.1} parent=0 // pred_check
    _
  $region11: #{actor_forward.1} parent=0 // pred_check_branch
    %17 = sbr.rel (0) target = $region13
  $region12: #{actor_forward.1} parent=0 // pred_region
    _
  $region13: #{actor_forward.1} parent=0 // pred_fallthru
    _
  // Predicated region
  $region14: #{actor_forward.1} parent=0 // pred_check
    _
  $region15: #{actor_forward.1} parent=0 // pred_check_branch
    %19 = sbr.rel (0) target = $region17
  $region16: #{actor_forward.1} parent=0 // pred_region
    _
  $region17: #{actor_forward.1} parent=0 // pred_fallthru
    _
  // Predicated region
  $region18: #{actor_forward.1} parent=0 // pred_check
    _
  $region19: #{actor_forward.1} parent=0 // pred_check_branch
    %21 = sbr.rel (0) target = $region21
  $region20: #{actor_forward.1} parent=0 // pred_region
    _
  $region21: #{actor_forward.1} parent=0 // pred_fallthru
    _
  // Predicated region
  $region22: #{actor_forward.1} parent=0 // pred_check
    _
  $region23: #{actor_forward.1} parent=0 // pred_check_branch
    %23 = sbr.rel (0) target = $region25
  $region24: #{actor_forward.1} parent=0 // pred_region
    _
  $region25: #{actor_forward.1} parent=0 // pred_fallthru
    _
  // Predicated region
  $region26: #{actor_forward.1} parent=0 // pred_check
    _
  $region27: #{actor_forward.1} parent=0 // pred_check_branch
    %25 = sbr.rel (0) target = $region29
  $region28: #{actor_forward.1} parent=0 // pred_region
    _
  $region29: #{actor_forward.1} parent=0 // pred_fallthru
    _
  %v26 = vld [vmem:[%s1] sm:$0xff]
  %v27 = vld [vmem:[%s1 + $0x8] sm:$0xff]
  %v28 = vld [vmem:[%s1 + $0x10] sm:$0xff]
  %v29 = vld [vmem:[%s1 + $0x18] sm:$0xff]
  %v30 = vld [vmem:[%s3] sm:$0xff]
  %v31 = vld [vmem:[%s3 + $0x8] sm:$0xff]
  %v32 = vld [vmem:[%s3 + $0x10] sm:$0xff]
  %v33 = vld [vmem:[%s3 + $0x18] sm:$0xff]
  %v34 = vld [vmem:[%s5] sm:$0xff]
  %v35 = vld [vmem:[%s2] sm:$0xff]
  %v36 = vld [vmem:[%s2 + $0x8] sm:$0xff]
  %v37 = vld [vmem:[%s2 + $0x10] sm:$0xff]
  %v38 = vld [vmem:[%s2 + $0x18] sm:$0xff]
  %v39 = vld [vmem:[%s4] sm:$0xff]
  %v40 = vld [vmem:[%s4 + $0x8] sm:$0xff]
  %v41 = vld [vmem:[%s4 + $0x10] sm:$0xff]
  %v42 = vld [vmem:[%s4 + $0x18] sm:$0xff]
  %v43 = vld [vmem:[%s6] sm:$0xff]
  loop: start=0, step=1, limit=3
  $region30: #{actor_forward.1} parent=0 // loop_pre_header
    _
  $region31: #{actor_forward.1} parent=0 // loop_header
    %s45 = sphi 0, %s49
    %p46 = scmp.ge.s32.totalorder %s45, 3
  $region32: #{actor_forward.1} parent=0 // loop_header_branch
    %48 = sbr.rel (%p46) target = $region36
  $region33: #{actor_forward.1} parent=0 // loop_body
    %s50 = smul.u32 %s45, 128
    %s51 = scalar_lea.vmem %s0, %s50
    %v52 = vld [vmem:[%s51] sm:$0xff]
    %v53 = vld [vmem:[%s51 + $0x8] sm:$0xff]
    %v54 = vld [vmem:[%s51 + $0x10] sm:$0xff]
    %v55 = vld [vmem:[%s51 + $0x18] sm:$0xff]
    %v56 = vld [vmem:[%s51 + $0x20] sm:$0xff]
    %v57 = vld [vmem:[%s51 + $0x28] sm:$0xff]
    %v58 = vld [vmem:[%s51 + $0x30] sm:$0xff]
    %v59 = vld [vmem:[%s51 + $0x38] sm:$0xff]
    %v60 = vld [vmem:[%s51 + $0x40] sm:$0xff]
    %v61 = vld [vmem:[%s51 + $0x48] sm:$0xff]
    %v62 = vld [vmem:[%s51 + $0x50] sm:$0xff]
    %v63 = vld [vmem:[%s51 + $0x58] sm:$0xff]
    %v64 = vld [vmem:[%s51 + $0x60] sm:$0xff]
    %v65 = vld [vmem:[%s51 + $0x68] sm:$0xff]
    %v66 = vld [vmem:[%s51 + $0x70] sm:$0xff]
    %v67 = vld [vmem:[%s51 + $0x78] sm:$0xff]
    %69 = vset.pattern.permute.xlu0 0
    %70 = vperm.xlu0 %69, %v35
    %v71 = vpop.permute.xlu0 %70
    %74 = vset.pattern.permute.xlu0 0
    %75 = vperm.xlu0 %74, %v36
    %v76 = vpop.permute.xlu0 %75
    %79 = vset.pattern.permute.xlu0 0
    %80 = vperm.xlu0 %79, %v37
    %v81 = vpop.permute.xlu0 %80
    %84 = vset.pattern.permute.xlu0 0
    %85 = vperm.xlu0 %84, %v38
    %v86 = vpop.permute.xlu0 %85
    %vm88 = vcmask 130048
    %v90 = vsel %vm88, %v26, 0
    %v93 = vsel %vm88, %v27, 0
    %v96 = vsel %vm88, %v28, 0
    %v99 = vsel %vm88, %v29, 0
    %v102 = vsel %vm88, %v52, 0
    %v105 = vsel %vm88, %v53, 0
    %v108 = vsel %vm88, %v54, 0
    %v111 = vsel %vm88, %v55, 0
    %v114 = vsel %vm88, %v56, 0
    %v117 = vsel %vm88, %v57, 0
    %v120 = vsel %vm88, %v58, 0
    %v123 = vsel %vm88, %v59, 0
    %v126 = vsel %vm88, %v60, 0
    %v129 = vsel %vm88, %v61, 0
    %v132 = vsel %vm88, %v62, 0
    %v135 = vsel %vm88, %v63, 0
    %v138 = vsel %vm88, %v64, 0
    %v141 = vsel %vm88, %v65, 0
    %v144 = vsel %vm88, %v66, 0
    %v147 = vsel %vm88, %v67, 0
    %149 = vmatprep.subr.mxu0 0.0
    %150 = vmatpush1.xpose.msra.mxu0 %v102
    %151 = vmatprep.subr.mxu0 0.0
    %152 = vmatpush1.xpose.msra.mxu0 %v105
    %153 = vmatprep.subr.mxu0 0.0
    %154 = vmatpush1.xpose.msra.mxu0 %v108
    %155 = vmatprep.subr.mxu0 0.0
    %156 = vmatpush1.xpose.msra.mxu0 %v111
    %157 = vmatprep.subr.mxu0 0.0
    %158 = vmatpush1.xpose.msra.mxu0 %v114
    %159 = vmatprep.subr.mxu0 0.0
    %160 = vmatpush1.xpose.msra.mxu0 %v117
    %161 = vmatprep.subr.mxu0 0.0
    %162 = vmatpush1.xpose.msra.mxu0 %v120
    %163 = vmatprep.subr.mxu0 0.0
    %164 = vmatpush1.xpose.msra.mxu0 %v123
    %165 = vmatprep.subr.mxu0 0.0
    %166 = vmatpush1.xpose.msra.mxu0 %v126
    %167 = vmatprep.subr.mxu0 0.0
    %168 = vmatpush1.xpose.msra.mxu0 %v129
    %169 = vmatprep.subr.mxu0 0.0
    %170 = vmatpush1.xpose.msra.mxu0 %v132
    %171 = vmatprep.subr.mxu0 0.0
    %172 = vmatpush1.xpose.msra.mxu0 %v135
    %173 = vmatprep.subr.mxu0 0.0
    %174 = vmatpush1.xpose.msra.mxu0 %v138
    %175 = vmatprep.subr.mxu0 0.0
    %176 = vmatpush1.xpose.msra.mxu0 %v141
    %177 = vmatprep.subr.mxu0 0.0
    %178 = vmatpush1.xpose.msra.mxu0 %v144
    %179 = vmatprep.subr.mxu0 0.0
    %180 = vmatpush1.xpose.msra.mxu0 %v147
    %181 = vmatprep.subr.mxu0 0.0
    %182 = vmatpush1.xpose.msra.mxu0 0.0
    %183 = vmatprep.subr.mxu0 0.0
    %184 = vmatpush1.xpose.msra.mxu0 0.0
    %185 = vmatprep.subr.mxu0 0.0
    %186 = vmatpush1.xpose.msra.mxu0 0.0
    %187 = vmatprep.subr.mxu0 0.0
    %188 = vmatpush1.xpose.msra.mxu0 0.0
    %189 = vmatprep.subr.mxu0 0.0
    %190 = vmatpush1.xpose.msra.mxu0 0.0
    %191 = vmatprep.subr.mxu0 0.0
    %192 = vmatpush1.xpose.msra.mxu0 0.0
    %193 = vmatprep.subr.mxu0 0.0
    %194 = vmatpush1.xpose.msra.mxu0 0.0
    %195 = vmatprep.subr.mxu0 0.0
    %196 = vmatpush1.xpose.msra.mxu0 0.0
    %197 = vmatprep.subr.mxu0 0.0
    %198 = vmatpush1.xpose.msra.mxu0 0.0
    %199 = vmatprep.subr.mxu0 0.0
    %200 = vmatpush1.xpose.msra.mxu0 0.0
    %201 = vmatprep.subr.mxu0 0.0
    %202 = vmatpush1.xpose.msra.mxu0 0.0
    %203 = vmatprep.subr.mxu0 0.0
    %204 = vmatpush1.xpose.msra.mxu0 0.0
    %205 = vmatprep.subr.mxu0 0.0
    %206 = vmatpush1.xpose.msra.mxu0 0.0
    %207 = vmatprep.subr.mxu0 0.0
    %208 = vmatpush1.xpose.msra.mxu0 0.0
    %209 = vmatprep.subr.mxu0 0.0
    %210 = vmatpush1.xpose.msra.mxu0 0.0
    %211 = vmatprep.subr.mxu0 0.0
    %212 = vmatpush1.xpose.msra.mxu0 0.0
    %213 = vmatprep.mubr.f32.mxu0 0.0
    %214 = vmatmul.mubr.f32.gmra.mrb[0].mxu0 %v90
    %v215 = vpop.f32.mrb[0].mxu0
    %v216 = vadd.f32 %v71, %v215
    %v217 = vpop.f32.mrb[0].mxu0
    %218 = vmatprep.mubr.f32.mxu0 0.0
    %219 = vmatmul.mubr.f32.gmra.mrb[0].mxu0 %v93
    %v220 = vpop.f32.mrb[0].mxu0
    %v221 = vadd.f32 %v76, %v220
    %v222 = vpop.f32.mrb[0].mxu0
    %223 = vmatprep.mubr.f32.mxu0 0.0
    %224 = vmatmul.mubr.f32.gmra.mrb[0].mxu0 %v96
    %v225 = vpop.f32.mrb[0].mxu0
    %v226 = vadd.f32 %v81, %v225
    %v227 = vpop.f32.mrb[0].mxu0
    %228 = vmatprep.mubr.f32.mxu0 0.0
    %229 = vmatmul.mubr.f32.gmra.mrb[0].mxu0 %v99
    %v230 = vpop.f32.mrb[0].mxu0
    %v231 = vadd.f32 %v86, %v230
    %v232 = vpop.f32.mrb[0].mxu0
    %233 = vdwg.mxu0
    %v234 = vtanh.pop %v216
    %v235 = vtanh.pop %v221
    %v236 = vtanh.pop %v226
    %v237 = vtanh.pop %v231
    %239 = vset.pattern.permute.xlu0 0
    %240 = vperm.xlu0 %239, %v39
    %v241 = vpop.permute.xlu0 %240
    %244 = vset.pattern.permute.xlu0 0
    %245 = vperm.xlu0 %244, %v40
    %v246 = vpop.permute.xlu0 %245
    %249 = vset.pattern.permute.xlu0 0
    %250 = vperm.xlu0 %249, %v41
    %v251 = vpop.permute.xlu0 %250
    %254 = vset.pattern.permute.xlu0 0
    %255 = vperm.xlu0 %254, %v42
    %v256 = vpop.permute.xlu0 %255
    %vm258 = vcmask 261120
    %v260 = vsel %vm258, %v30, 0
    %v263 = vsel %vm258, %v31, 0
    %v266 = vsel %vm258, %v32, 0
    %v269 = vsel %vm258, %v33, 0
    %271 = vmatprep.subr.mxu0 0.0
    %272 = vmatpush1.msra.mxu0 %v234
    %273 = vmatprep.subr.mxu0 0.0
    %274 = vmatpush1.msra.mxu0 %v235
    %275 = vmatprep.subr.mxu0 0.0
    %276 = vmatpush1.msra.mxu0 %v236
    %277 = vmatprep.subr.mxu0 0.0
    %278 = vmatpush1.msra.mxu0 %v237
    %279 = vmatprep.subr.mxu0 0.0
    %280 = vmatpush1.msra.mxu0 0.0
    %281 = vmatprep.subr.mxu0 0.0
    %282 = vmatpush1.msra.mxu0 0.0
    %283 = vmatprep.subr.mxu0 0.0
    %284 = vmatpush1.msra.mxu0 0.0
    %285 = vmatprep.subr.mxu0 0.0
    %286 = vmatpush1.msra.mxu0 0.0
    %287 = vmatprep.subr.mxu0 0.0
    %288 = vmatpush1.msra.mxu0 0.0
    %289 = vmatprep.subr.mxu0 0.0
    %290 = vmatpush1.msra.mxu0 0.0
    %291 = vmatprep.subr.mxu0 0.0
    %292 = vmatpush1.msra.mxu0 0.0
    %293 = vmatprep.subr.mxu0 0.0
    %294 = vmatpush1.msra.mxu0 0.0
    %295 = vmatprep.subr.mxu0 0.0
    %296 = vmatpush1.msra.mxu0 0.0
    %297 = vmatprep.subr.mxu0 0.0
    %298 = vmatpush1.msra.mxu0 0.0
    %299 = vmatprep.subr.mxu0 0.0
    %300 = vmatpush1.msra.mxu0 0.0
    %301 = vmatprep.subr.mxu0 0.0
    %302 = vmatpush1.msra.mxu0 0.0
    %303 = vmatprep.subr.mxu0 0.0
    %304 = vmatpush1.msra.mxu0 0.0
    %305 = vmatprep.subr.mxu0 0.0
    %306 = vmatpush1.msra.mxu0 0.0
    %307 = vmatprep.subr.mxu0 0.0
    %308 = vmatpush1.msra.mxu0 0.0
    %309 = vmatprep.subr.mxu0 0.0
    %310 = vmatpush1.msra.mxu0 0.0
    %311 = vmatprep.subr.mxu0 0.0
    %312 = vmatpush1.msra.mxu0 0.0
    %313 = vmatprep.subr.mxu0 0.0
    %314 = vmatpush1.msra.mxu0 0.0
    %315 = vmatprep.subr.mxu0 0.0
    %316 = vmatpush1.msra.mxu0 0.0
    %317 = vmatprep.subr.mxu0 0.0
    %318 = vmatpush1.msra.mxu0 0.0
    %319 = vmatprep.subr.mxu0 0.0
    %320 = vmatpush1.msra.mxu0 0.0
    %321 = vmatprep.subr.mxu0 0.0
    %322 = vmatpush1.msra.mxu0 0.0
    %323 = vmatprep.subr.mxu0 0.0
    %324 = vmatpush1.msra.mxu0 0.0
    %325 = vmatprep.subr.mxu0 0.0
    %326 = vmatpush1.msra.mxu0 0.0
    %327 = vmatprep.subr.mxu0 0.0
    %328 = vmatpush1.msra.mxu0 0.0
    %329 = vmatprep.subr.mxu0 0.0
    %330 = vmatpush1.msra.mxu0 0.0
    %331 = vmatprep.subr.mxu0 0.0
    %332 = vmatpush1.msra.mxu0 0.0
    %333 = vmatprep.subr.mxu0 0.0
    %334 = vmatpush1.msra.mxu0 0.0
    %335 = vmatprep.mubr.f32.mxu0 0.0
    %336 = vmatmul.mubr.f32.gmra.mrb[0].mxu0 %v260
    %v337 = vpop.f32.mrb[0].mxu0
    %v338 = vadd.f32 %v241, %v337
    %v339 = vpop.f32.mrb[0].mxu0
    %340 = vmatprep.mubr.f32.mxu0 0.0
    %341 = vmatmul.mubr.f32.gmra.mrb[0].mxu0 %v263
    %v342 = vpop.f32.mrb[0].mxu0
    %v343 = vadd.f32 %v246, %v342
    %v344 = vpop.f32.mrb[0].mxu0
    %345 = vmatprep.mubr.f32.mxu0 0.0
    %346 = vmatmul.mubr.f32.gmra.mrb[0].mxu0 %v266
    %v347 = vpop.f32.mrb[0].mxu0
    %v348 = vadd.f32 %v251, %v347
    %v349 = vpop.f32.mrb[0].mxu0
    %350 = vmatprep.mubr.f32.mxu0 0.0
    %351 = vmatmul.mubr.f32.gmra.mrb[0].mxu0 %v269
    %v352 = vpop.f32.mrb[0].mxu0
    %v353 = vadd.f32 %v256, %v352
    %v354 = vpop.f32.mrb[0].mxu0
    %355 = vdwg.mxu0
    %v356 = vtanh.pop %v338
    %v357 = vtanh.pop %v343
    %v358 = vtanh.pop %v348
    %v359 = vtanh.pop %v353
    %361 = vset.pattern.permute.xlu0 0
    %362 = vperm.xlu0 %361, %v43
    %v363 = vpop.permute.xlu0 %362
    %v366 = vsel %vm258, %v34, 0
    %368 = vmatprep.subr.mxu0 0.0
    %369 = vmatpush1.msra.mxu0 %v356
    %370 = vmatprep.subr.mxu0 0.0
    %371 = vmatpush1.msra.mxu0 %v357
    %372 = vmatprep.subr.mxu0 0.0
    %373 = vmatpush1.msra.mxu0 %v358
    %374 = vmatprep.subr.mxu0 0.0
    %375 = vmatpush1.msra.mxu0 %v359
    %376 = vmatprep.subr.mxu0 0.0
    %377 = vmatpush1.msra.mxu0 0.0
    %378 = vmatprep.subr.mxu0 0.0
    %379 = vmatpush1.msra.mxu0 0.0
    %380 = vmatprep.subr.mxu0 0.0
    %381 = vmatpush1.msra.mxu0 0.0
    %382 = vmatprep.subr.mxu0 0.0
    %383 = vmatpush1.msra.mxu0 0.0
    %384 = vmatprep.subr.mxu0 0.0
    %385 = vmatpush1.msra.mxu0 0.0
    %386 = vmatprep.subr.mxu0 0.0
    %387 = vmatpush1.msra.mxu0 0.0
    %388 = vmatprep.subr.mxu0 0.0
    %389 = vmatpush1.msra.mxu0 0.0
    %390 = vmatprep.subr.mxu0 0.0
    %391 = vmatpush1.msra.mxu0 0.0
    %392 = vmatprep.subr.mxu0 0.0
    %393 = vmatpush1.msra.mxu0 0.0
    %394 = vmatprep.subr.mxu0 0.0
    %395 = vmatpush1.msra.mxu0 0.0
    %396 = vmatprep.subr.mxu0 0.0
    %397 = vmatpush1.msra.mxu0 0.0
    %398 = vmatprep.subr.mxu0 0.0
    %399 = vmatpush1.msra.mxu0 0.0
    %400 = vmatprep.subr.mxu0 0.0
    %401 = vmatpush1.msra.mxu0 0.0
    %402 = vmatprep.subr.mxu0 0.0
    %403 = vmatpush1.msra.mxu0 0.0
    %404 = vmatprep.subr.mxu0 0.0
    %405 = vmatpush1.msra.mxu0 0.0
    %406 = vmatprep.subr.mxu0 0.0
    %407 = vmatpush1.msra.mxu0 0.0
    %408 = vmatprep.subr.mxu0 0.0
    %409 = vmatpush1.msra.mxu0 0.0
    %410 = vmatprep.subr.mxu0 0.0
    %411 = vmatpush1.msra.mxu0 0.0
    %412 = vmatprep.subr.mxu0 0.0
    %413 = vmatpush1.msra.mxu0 0.0
    %414 = vmatprep.subr.mxu0 0.0
    %415 = vmatpush1.msra.mxu0 0.0
    %416 = vmatprep.subr.mxu0 0.0
    %417 = vmatpush1.msra.mxu0 0.0
    %418 = vmatprep.subr.mxu0 0.0
    %419 = vmatpush1.msra.mxu0 0.0
    %420 = vmatprep.subr.mxu0 0.0
    %421 = vmatpush1.msra.mxu0 0.0
    %422 = vmatprep.subr.mxu0 0.0
    %423 = vmatpush1.msra.mxu0 0.0
    %424 = vmatprep.subr.mxu0 0.0
    %425 = vmatpush1.msra.mxu0 0.0
    %426 = vmatprep.subr.mxu0 0.0
    %427 = vmatpush1.msra.mxu0 0.0
    %428 = vmatprep.subr.mxu0 0.0
    %429 = vmatpush1.msra.mxu0 0.0
    %430 = vmatprep.subr.mxu0 0.0
    %431 = vmatpush1.msra.mxu0 0.0
    %432 = vmatprep.mubr.f32.mxu0 0.0
    %433 = vmatmul.mubr.f32.gmra.mrb[0].mxu0 %v366
    %v434 = vpop.f32.mrb[0].mxu0
    %v435 = vadd.f32 %v363, %v434
    %v436 = vpop.f32.mrb[0].mxu0
    %437 = vdwg.mxu0
    %v438 = vrot.slane %v435, 4
    %v439 = vmax.f32 %v435, %v438
    %v440 = vrot.slane %v439, 2
    %v441 = vmax.f32 %v439, %v440
    %v442 = vrot.slane %v441, 1
    %v443 = vmax.f32 %v441, %v442
    %v444 = vsub.f32 %v435, %v443
    %v445 = vmul.f32 %v444, 1.442695
    %v446 = vpow.pop %v445
    %v447 = vrot.slane %v446, 4
    %v448 = vadd.f32 %v446, %v447
    %v449 = vrot.slane %v448, 2
    %v450 = vadd.f32 %v448, %v449
    %v451 = vrot.slane %v450, 1
    %v452 = vadd.f32 %v450, %v451
    %v453 = vrcp.pop %v452
    %v454 = vmul.f32 %v446, %v453
    %s455 = sshra.s32 %s50, 7
    %s456 = sand.u32 %s50, 127
    %s457 = smul.addr %s455, 8
    %s458 = scalar_lea.vmem %s7, %s457
    %459 = vst [vmem:[%s458] sm:$0xff] %v454
  $region34: #{actor_forward.1} parent=0 // loop_footer
    %s49 = sadd.s32 1, %s45
  $region35: #{actor_forward.1} parent=0 // loop_footer_branch
    %44 = sbr.rel target = $region31
  $region36: #{actor_forward.1} parent=0 // loop_exit
    _
  // Predicated region
  $region37: #{actor_forward.1} parent=0 // pred_check
    _
  $region38: #{actor_forward.1} parent=0 // pred_check_branch
    %461 = sbr.rel (0) target = $region40
  $region39: #{actor_forward.1} parent=0 // pred_region
    _
  $region40: #{actor_forward.1} parent=0 // pred_fallthru
    _
  // Predicated region
  $region41: #{actor_forward.1} parent=0 // pred_check
    _
  $region42: #{actor_forward.1} parent=0 // pred_check_branch
    %463 = sbr.rel (0) target = $region44
  $region43: #{actor_forward.1} parent=0 // pred_region
    _
  $region44: #{actor_forward.1} parent=0 // pred_fallthru
    _

</llo_original>
